<compile_context>
chip_gen: v6e
topology: v6e:2x2x1
jax: 0.10.0
libtpu: 0.0.40
codegen_flags: <defaults>
</compile_context>

<pallas_src>
import functools

import jax
import jax.numpy as jnp
from jax.experimental import pallas as pl
from jax.experimental.pallas import tpu as pltpu

H1, H2 = 400, 300  # hidden sizes hard-coded in the PyTorch Actor


def _round_up(n, m):
    return ((n + m - 1) // m) * m


# ----------------------------------------------------------------------------
# Kernel: three MXU matmuls, f32 bias add / ReLU / tanh, bf16 matmul operands.
#   x_ref  : (Bt, NI_pad)      bf16
#   w1_ref : (NI_pad, H1_pad)  bf16   b1_ref : (1, H1_pad) f32
#   w2_ref : (H1_pad, H2_pad)  bf16   b2_ref : (1, H2_pad) f32
#   w3_ref : (H2_pad, NO_pad)  bf16   b3_ref : (1, NO_pad) f32
#   o_ref  : (Bt, NO_pad)      f32
# Padded rows / lanes are zero-filled, so padded outputs are tanh(0)=0 and are
# sliced off in the wrapper.
# ----------------------------------------------------------------------------
def actor_kernel(x_ref, w1_ref, b1_ref, w2_ref, b2_ref, w3_ref, b3_ref, o_ref):
    # Layer 1: Linear -> ReLU  (bf16 operands, f32 accumulate / bias / ReLU)
    h1 = jnp.dot(x_ref[...], w1_ref[...], preferred_element_type=jnp.float32)
    h1 = jnp.maximum(h1 + b1_ref[...], 0.0).astype(jnp.bfloat16)
    # Layer 2: Linear -> ReLU
    h2 = jnp.dot(h1, w2_ref[...], preferred_element_type=jnp.float32)
    h2 = jnp.maximum(h2 + b2_ref[...], 0.0).astype(jnp.bfloat16)
    # Layer 3: Linear -> Tanh (EUP), stored f32
    h3 = jnp.dot(h2, w3_ref[...], preferred_element_type=jnp.float32) + b3_ref[...]
    o_ref[...] = jnp.tanh(h3).astype(o_ref.dtype)


# ----------------------------------------------------------------------------
# Parameter packing: zero-pad feature dims to 128-lane multiples; weights in
# bf16 (MXU operands), biases in f32 (added post-matmul at full precision).
# ----------------------------------------------------------------------------
def prepare_actor_params(params, num_inputs, num_outputs, w_dtype=jnp.bfloat16):
    ni_pad = _round_up(num_inputs, 128)   # e.g. 128
    h1_pad = _round_up(H1, 128)           # 512
    h2_pad = _round_up(H2, 128)           # 384
    no_pad = _round_up(num_outputs, 128)  # 128

    def pad_w(w, r, c):
        return jnp.pad(w.astype(jnp.float32),
                       ((0, r - w.shape[0]), (0, c - w.shape[1]))).astype(w_dtype)

    def pad_b(b, c):
        b = b.reshape(1, -1).astype(jnp.float32)
        return jnp.pad(b, ((0, 0), (0, c - b.shape[1])))

    w1 = pad_w(params["w1"], ni_pad, h1_pad)
    w2 = pad_w(params["w2"], h1_pad, h2_pad)
    w3 = pad_w(params["w3"], h2_pad, no_pad)
    b1 = pad_b(params["b1"], h1_pad)
    b2 = pad_b(params["b2"], h2_pad)
    b3 = pad_b(params["b3"], no_pad)
    return w1, b1, w2, b2, w3, b3


# ----------------------------------------------------------------------------
# Forward wrapper.
# ----------------------------------------------------------------------------
def actor_forward(x, w1, b1, w2, b2, w3, b3, num_outputs):
    b, ni = x.shape
    ni_pad, h1_pad = w1.shape
    h2_pad, no_pad = w3.shape

    # Batch tiling: one big tile (<= 512 rows, multiple of 8) when it fits;
    # for larger batches keep the grid at >= 2 steps so the "parallel" batch
    # axis can be split across both TensorCores on v7x.
    b8 = _round_up(b, 8)
    if b8 <= 512:
        bt = b8
    else:
        bt = min(512, _round_up(-(-b8 // 2), 8))
    b_pad = _round_up(b8, bt)
    grid = (b_pad // bt,)

    # Single fused cast+pad of the input (no zeros + scatter round trips).
    x_aug = jnp.pad(x.astype(jnp.bfloat16),
                    ((0, b_pad - b), (0, ni_pad - ni)))

    flops = 2 * b_pad * (ni_pad * h1_pad + h1_pad * h2_pad + h2_pad * no_pad)
    bytes_accessed = (2 * (x_aug.size + w1.size + w2.size + w3.size)
                      + 4 * (b1.size + b2.size + b3.size)
                      + 4 * b_pad * no_pad)

    # Constant-index weight / bias specs: DMA'd once, VMEM-resident across all
    # batch-grid steps; single-buffered since their index map never changes.
    resident = functools.partial(pl.BlockSpec, pipeline_mode=pl.Buffered(1))

    out = pl.pallas_call(
        actor_kernel,
        out_shape=jax.ShapeDtypeStruct((b_pad, no_pad), jnp.float32),
        grid=grid,
        in_specs=[
            pl.BlockSpec((bt, ni_pad), lambda i: (i, 0)),
            resident((ni_pad, h1_pad), lambda i: (0, 0)),
            resident((1, h1_pad), lambda i: (0, 0)),
            resident((h1_pad, h2_pad), lambda i: (0, 0)),
            resident((1, h2_pad), lambda i: (0, 0)),
            resident((h2_pad, no_pad), lambda i: (0, 0)),
            resident((1, no_pad), lambda i: (0, 0)),
        ],
        out_specs=pl.BlockSpec((bt, no_pad), lambda i: (i, 0)),
        compiler_params=pltpu.CompilerParams(
            dimension_semantics=("parallel",)),
        cost_estimate=pl.CostEstimate(
            flops=flops,
            transcendentals=b_pad * no_pad,
            bytes_accessed=bytes_accessed),
    )(x_aug, w1, b1, w2, b2, w3, b3)

    return out[:b, :num_outputs]


# ----------------------------------------------------------------------------
# Init + references.
# ----------------------------------------------------------------------------
def init_actor_params(key, num_inputs, num_outputs, dtype=jnp.float32):
    """PyTorch-Linear-style init: U(-1/sqrt(fan_in), +1/sqrt(fan_in))."""
    ks = jax.random.split(key, 6)

    def lin(kw, kb, fan_in, fan_out):
        bound = 1.0 / jnp.sqrt(jnp.asarray(fan_in, dtype))
        w = jax.random.uniform(kw, (fan_in, fan_out), dtype, -bound, bound)
        b = jax.random.uniform(kb, (1, fan_out), dtype, -bound, bound)
        return w, b

    w1, b1 = lin(ks[0], ks[1], num_inputs, H1)
    w2, b2 = lin(ks[2], ks[3], H1, H2)
    w3, b3 = lin(ks[4], ks[5], H2, num_outputs)
    return {"w1": w1, "b1": b1, "w2": w2, "b2": b2, "w3": w3, "b3": b3}


def actor_reference(x, params, operand_dtype=jnp.float32):
    """Pure-JAX reference. operand_dtype mirrors the kernel's matmul operand
    precision (bf16); accumulation and bias add are always f32."""
    def dense(h, w, b):
        y = jnp.dot(h.astype(operand_dtype), w.astype(operand_dtype),
                    preferred_element_type=jnp.float32)
        return y + b.astype(jnp.float32)

    h1 = jnp.maximum(dense(x, params["w1"], params["b1"]), 0.0)
    h2 = jnp.maximum(dense(h1, params["w2"], params["b2"]), 0.0)
    return jnp.tanh(dense(h2, params["w3"], params["b3"]))


if __name__ == "__main__":
    key = jax.random.PRNGKey(0)
    k_param, k_x = jax.random.split(key)

    batch = 2
    num_inputs = 32     # observation dim
    num_outputs = 8     # action_space.shape[0]
    # (hidden_size arg of Actor.__init__ is unused by the PyTorch module.)

    params = init_actor_params(k_param, num_inputs, num_outputs)
    packed = prepare_actor_params(params, num_inputs, num_outputs)
    x = jax.random.normal(k_x, (batch, num_inputs), jnp.float32)

    fwd = jax.jit(functools.partial(actor_forward, num_outputs=num_outputs))
    out = jax.block_until_ready(fwd(x, *packed))

    ref_bf16 = actor_reference(x, params, operand_dtype=jnp.bfloat16)  # kernel semantics
    ref_f32 = actor_reference(x, params, operand_dtype=jnp.float32)    # PyTorch semantics

    assert out.shape == (batch, num_outputs)
    # Loosened vs bf16 reference: MXU vs XLA rounding of bf16 operands differs.
    assert jnp.allclose(out, ref_bf16, atol=2e-2, rtol=2e-2), \
        "mismatch vs bf16-operand reference"
    assert jnp.allclose(out, ref_f32, atol=5e-2), \
        "mismatch vs f32 reference"

    print("KERNEL_OK")
</pallas_src>

<mosaic_0001>
module attributes {stable_mosaic.version = 11 : i64} {
  func.func @actor_kernel(%arg0: i32, %arg1: memref<8x128xbf16, #tpu.memory_space<vmem>>, %arg2: memref<128x512xbf16, #tpu.memory_space<vmem>>, %arg3: memref<1x512xf32, #tpu.memory_space<vmem>>, %arg4: memref<512x384xbf16, #tpu.memory_space<vmem>>, %arg5: memref<1x384xf32, #tpu.memory_space<vmem>>, %arg6: memref<384x128xbf16, #tpu.memory_space<vmem>>, %arg7: memref<1x128xf32, #tpu.memory_space<vmem>>, %arg8: memref<8x128xf32, #tpu.memory_space<vmem>>) attributes {dimension_semantics = [#tpu.dimension_semantics<parallel>], iteration_bounds = array<i64: 1>, scalar_prefetch = 0 : i64, scratch_operands = 0 : i64, tpu.core_type = #tpu.core_type<tc>, window_params = [{transform_indices = @transform_0, window_bounds = array<i64: 8, 128>}, {pipeline_mode = #tpu.pipeline_mode<synchronous>, transform_indices = @transform_1, window_bounds = array<i64: 128, 512>}, {pipeline_mode = #tpu.pipeline_mode<synchronous>, transform_indices = @transform_2, window_bounds = array<i64: 1, 512>}, {pipeline_mode = #tpu.pipeline_mode<synchronous>, transform_indices = @transform_3, window_bounds = array<i64: 512, 384>}, {pipeline_mode = #tpu.pipeline_mode<synchronous>, transform_indices = @transform_4, window_bounds = array<i64: 1, 384>}, {pipeline_mode = #tpu.pipeline_mode<synchronous>, transform_indices = @transform_5, window_bounds = array<i64: 384, 128>}, {pipeline_mode = #tpu.pipeline_mode<synchronous>, transform_indices = @transform_6, window_bounds = array<i64: 1, 128>}, {transform_indices = @transform_7, window_bounds = array<i64: 8, 128>}]} {
    %c0 = arith.constant 0 : index
    %c0_0 = arith.constant 0 : index
    %0 = vector.load %arg1[%c0, %c0_0] : memref<8x128xbf16, #tpu.memory_space<vmem>>, vector<8x128xbf16>
    %c0_1 = arith.constant 0 : index
    %c0_2 = arith.constant 0 : index
    %1 = vector.load %arg2[%c0_1, %c0_2] : memref<128x512xbf16, #tpu.memory_space<vmem>>, vector<128x512xbf16>
    %cst = arith.constant dense<0.000000e+00> : vector<8x512xf32>
    %2 = tpu.matmul %0, %1, %cst {dimension_numbers = #tpu.dot_dimension_numbers<[1], [0], [0], [1], [0, 0, 1, 1], [], []>} : vector<8x128xbf16>, vector<128x512xbf16>, vector<8x512xf32> -> vector<8x512xf32>
    %c0_3 = arith.constant 0 : index
    %c0_4 = arith.constant 0 : index
    %3 = vector.load %arg3[%c0_3, %c0_4] : memref<1x512xf32, #tpu.memory_space<vmem>>, vector<1x512xf32>
    %4 = vector.broadcast %3 : vector<1x512xf32> to vector<8x512xf32>
    %5 = arith.addf %2, %4 : vector<8x512xf32>
    %cst_5 = arith.constant 0.000000e+00 : f32
    %6 = vector.broadcast %cst_5 : f32 to vector<8x512xf32>
    %7 = arith.maximumf %5, %6 : vector<8x512xf32>
    %8 = arith.truncf %7 : vector<8x512xf32> to vector<8x512xbf16>
    %c0_6 = arith.constant 0 : index
    %c0_7 = arith.constant 0 : index
    %9 = vector.load %arg4[%c0_6, %c0_7] : memref<512x384xbf16, #tpu.memory_space<vmem>>, vector<512x384xbf16>
    %cst_8 = arith.constant dense<0.000000e+00> : vector<8x384xf32>
    %10 = tpu.matmul %8, %9, %cst_8 {dimension_numbers = #tpu.dot_dimension_numbers<[1], [0], [0], [1], [0, 0, 1, 1], [], []>} : vector<8x512xbf16>, vector<512x384xbf16>, vector<8x384xf32> -> vector<8x384xf32>
    %c0_9 = arith.constant 0 : index
    %c0_10 = arith.constant 0 : index
    %11 = vector.load %arg5[%c0_9, %c0_10] : memref<1x384xf32, #tpu.memory_space<vmem>>, vector<1x384xf32>
    %12 = vector.broadcast %11 : vector<1x384xf32> to vector<8x384xf32>
    %13 = arith.addf %10, %12 : vector<8x384xf32>
    %cst_11 = arith.constant 0.000000e+00 : f32
    %14 = vector.broadcast %cst_11 : f32 to vector<8x384xf32>
    %15 = arith.maximumf %13, %14 : vector<8x384xf32>
    %16 = arith.truncf %15 : vector<8x384xf32> to vector<8x384xbf16>
    %c0_12 = arith.constant 0 : index
    %c0_13 = arith.constant 0 : index
    %17 = vector.load %arg6[%c0_12, %c0_13] : memref<384x128xbf16, #tpu.memory_space<vmem>>, vector<384x128xbf16>
    %cst_14 = arith.constant dense<0.000000e+00> : vector<8x128xf32>
    %18 = tpu.matmul %16, %17, %cst_14 {dimension_numbers = #tpu.dot_dimension_numbers<[1], [0], [0], [1], [0, 0, 1, 1], [], []>} : vector<8x384xbf16>, vector<384x128xbf16>, vector<8x128xf32> -> vector<8x128xf32>
    %c0_15 = arith.constant 0 : index
    %c0_16 = arith.constant 0 : index
    %19 = vector.load %arg7[%c0_15, %c0_16] : memref<1x128xf32, #tpu.memory_space<vmem>>, vector<1x128xf32>
    %20 = vector.broadcast %19 : vector<1x128xf32> to vector<8x128xf32>
    %21 = arith.addf %18, %20 : vector<8x128xf32>
    %22 = math.tanh %21 : vector<8x128xf32>
    %c0_17 = arith.constant 0 : index
    %c0_18 = arith.constant 0 : index
    %23 = vector.load %arg8[%c0_17, %c0_18] : memref<8x128xf32, #tpu.memory_space<vmem>>, vector<8x128xf32>
    tpu.vector_store %arg8[%c0_17, %c0_18], %22 {strides = array<i32>} : memref<8x128xf32, #tpu.memory_space<vmem>>, vector<8x128xf32>,
    return
  }
  func.func @transform_0(%arg0: i32) -> (i32, i32) {
    %c0_i32 = arith.constant 0 : i32
    %c0_i32_0 = arith.constant 0 : i32
    return %arg0, %c0_i32 : i32, i32
  }
  func.func @transform_1(%arg0: i32) -> (i32, i32) {
    %c0_i32 = arith.constant 0 : i32
    %c0_i32_0 = arith.constant 0 : i32
    %c0_i32_1 = arith.constant 0 : i32
    return %c0_i32, %c0_i32_0 : i32, i32
  }
  func.func @transform_2(%arg0: i32) -> (i32, i32) {
    %c0_i32 = arith.constant 0 : i32
    %c0_i32_0 = arith.constant 0 : i32
    %c0_i32_1 = arith.constant 0 : i32
    return %c0_i32, %c0_i32_0 : i32, i32
  }
  func.func @transform_3(%arg0: i32) -> (i32, i32) {
    %c0_i32 = arith.constant 0 : i32
    %c0_i32_0 = arith.constant 0 : i32
    %c0_i32_1 = arith.constant 0 : i32
    return %c0_i32, %c0_i32_0 : i32, i32
  }
  func.func @transform_4(%arg0: i32) -> (i32, i32) {
    %c0_i32 = arith.constant 0 : i32
    %c0_i32_0 = arith.constant 0 : i32
    %c0_i32_1 = arith.constant 0 : i32
    return %c0_i32, %c0_i32_0 : i32, i32
  }
  func.func @transform_5(%arg0: i32) -> (i32, i32) {
    %c0_i32 = arith.constant 0 : i32
    %c0_i32_0 = arith.constant 0 : i32
    %c0_i32_1 = arith.constant 0 : i32
    return %c0_i32, %c0_i32_0 : i32, i32
  }
  func.func @transform_6(%arg0: i32) -> (i32, i32) {
    %c0_i32 = arith.constant 0 : i32
    %c0_i32_0 = arith.constant 0 : i32
    %c0_i32_1 = arith.constant 0 : i32
    return %c0_i32, %c0_i32_0 : i32, i32
  }
  func.func @transform_7(%arg0: i32) -> (i32, i32) {
    %c0_i32 = arith.constant 0 : i32
    %c0_i32_0 = arith.constant 0 : i32
    return %arg0, %c0_i32 : i32, i32
  }
}

</mosaic_0001>

<llo_original>
// kernel: actor_forward.1
$region0: #{actor_forward.1}
  #allocation0 [shape = 'u32[]', space=smem, size = 0x4, offset = 0x4, fixed_abs, tag = 'smem constant byte address 0x4 - core index']
  #allocation1 [shape = 'u32[144,128]{1,0:T(1,128)}', space=vmem, size = 0x12000, scoped, tag = 'internal scratch']
  %s0 = inlined_call_operand.vmem [shape: bf16[8,128], index: 0, kind: input, shape index: {}]
  %s1 = inlined_call_operand.hbm [shape: bf16[128,512], index: 1, kind: input, shape index: {}]
  %s2 = inlined_call_operand.vmem [shape: f32[1,512], index: 2, kind: input, shape index: {}]
  %s3 = inlined_call_operand.hbm [shape: bf16[512,384], index: 3, kind: input, shape index: {}]
  %s4 = inlined_call_operand.vmem [shape: f32[1,384], index: 4, kind: input, shape index: {}]
  %s5 = inlined_call_operand.hbm [shape: bf16[384,128], index: 5, kind: input, shape index: {}]
  %s6 = inlined_call_operand.vmem [shape: f32[1,128], index: 6, kind: input, shape index: {}]
  %s7 = inlined_call_operand.vmem [shape: f32[8,128], index: 7, kind: output, shape index: {}]
  %s8 = sld [smem:[#allocation0]]
  $region50: #{actor_forward.1} parent=0
    _
  %s10 = ssub.s32 1, %s8
  %s11 = scalar_select 0, %s10, %s8
  $region1: #{actor_forward.1} parent=0
    #allocation2 [shape = 'u8[131072]{0}', space=vmem, size = 0x20000, scoped, tag = 'input window, operand 1, single buffered']
    #allocation3 [shape = 's32[1]{0}', space=sflag, size = 0x4, scoped, tag = 'scoped memory for actor_forward.1']
    #allocation4 [shape = 'u8[393216]{0}', space=vmem, size = 0x60000, scoped, tag = 'input window, operand 3, single buffered']
    #allocation5 [shape = 's32[1]{0}', space=sflag, size = 0x4, scoped, tag = 'scoped memory for actor_forward.1']
    #allocation6 [shape = 'u8[98304]{0}', space=vmem, size = 0x18000, scoped, tag = 'input window, operand 5, single buffered']
    %12 = vsyncpa [#allocation3], 0
    %13 = vsyncpa [#allocation5], 0
    // Predicated region
    $region2: #{actor_forward.1} parent=1 // pred_check
      _
    $region3: #{actor_forward.1} parent=1 // pred_check_branch
      %15 = sbr.rel (0) target = $region5
    $region4: #{actor_forward.1} parent=1 // pred_region
      _
    $region5: #{actor_forward.1} parent=1 // pred_fallthru
      _
    // Predicated region
    $region6: #{actor_forward.1} parent=1 // pred_check
      _
    $region7: #{actor_forward.1} parent=1 // pred_check_branch
      %17 = sbr.rel (0) target = $region9
    $region8: #{actor_forward.1} parent=1 // pred_region
      %s19 = ssub.s32 4096, 4096
      %20 = vsyncadd [#allocation3], %s19
      %s21 = sshll.u32 [#allocation2], 4
      %s22 = int_to_ptr.vmem [resolvable:$true] %s21
      %27 = dma.hbm_to_vmem [thread:$0]  %s1, 4096, %s22, [#allocation3], 256, 256, 16
    $region9: #{actor_forward.1} parent=1 // pred_fallthru
      _
    // Predicated region
    $region10: #{actor_forward.1} parent=1 // pred_check
      _
    $region11: #{actor_forward.1} parent=1 // pred_check_branch
      %29 = sbr.rel (0) target = $region13
    $region12: #{actor_forward.1} parent=1 // pred_region
      _
    $region13: #{actor_forward.1} parent=1 // pred_fallthru
      _
    // Predicated region
    $region14: #{actor_forward.1} parent=1 // pred_check
      _
    $region15: #{actor_forward.1} parent=1 // pred_check_branch
      %31 = sbr.rel (0) target = $region17
    $region16: #{actor_forward.1} parent=1 // pred_region
      %s33 = ssub.s32 12288, 12288
      %34 = vsyncadd [#allocation5], %s33
      %s35 = sshll.u32 [#allocation4], 4
      %s36 = int_to_ptr.vmem [resolvable:$true] %s35
      %41 = dma.hbm_to_vmem [thread:$0]  %s3, 12288, %s36, [#allocation5], 192, 192, 12
    $region17: #{actor_forward.1} parent=1 // pred_fallthru
      _
    // Predicated region
    $region18: #{actor_forward.1} parent=1 // pred_check
      _
    $region19: #{actor_forward.1} parent=1 // pred_check_branch
      %43 = sbr.rel (0) target = $region21
    $region20: #{actor_forward.1} parent=1 // pred_region
      _
    $region21: #{actor_forward.1} parent=1 // pred_fallthru
      _
    // Predicated region
    $region22: #{actor_forward.1} parent=1 // pred_check
      _
    $region23: #{actor_forward.1} parent=1 // pred_check_branch
      %45 = sbr.rel (0) target = $region25
    $region24: #{actor_forward.1} parent=1 // pred_region
      %s47 = ssub.s32 3072, 3072
      %48 = vsyncadd [#allocation5], %s47
      %s49 = sshll.u32 [#allocation6], 4
      %s50 = int_to_ptr.vmem [resolvable:$true] %s49
      %55 = dma.hbm_to_vmem [thread:$0]  %s5, 3072, %s50, [#allocation5], 64, 64, 4
    $region25: #{actor_forward.1} parent=1 // pred_fallthru
      _
    // Predicated region
    $region26: #{actor_forward.1} parent=1 // pred_check
      _
    $region27: #{actor_forward.1} parent=1 // pred_check_branch
      %57 = sbr.rel (0) target = $region29
    $region28: #{actor_forward.1} parent=1 // pred_region
      _
    $region29: #{actor_forward.1} parent=1 // pred_fallthru
      _
    // Predicated region
    $region30: #{actor_forward.1} parent=1 // pred_check
      _
    $region31: #{actor_forward.1} parent=1 // pred_check_branch
      %59 = sbr.rel (0) target = $region33
    $region32: #{actor_forward.1} parent=1 // pred_region
      %60 = dma.done [#allocation3], 4096
    $region33: #{actor_forward.1} parent=1 // pred_fallthru
      _
    // Predicated region
    $region34: #{actor_forward.1} parent=1 // pred_check
      _
    $region35: #{actor_forward.1} parent=1 // pred_check_branch
      %62 = sbr.rel (0) target = $region37
    $region36: #{actor_forward.1} parent=1 // pred_region
      %63 = dma.done [#allocation5], 12288
    $region37: #{actor_forward.1} parent=1 // pred_fallthru
      _
    // Predicated region
    $region38: #{actor_forward.1} parent=1 // pred_check
      _
    $region39: #{actor_forward.1} parent=1 // pred_check_branch
      %65 = sbr.rel (0) target = $region41
    $region40: #{actor_forward.1} parent=1 // pred_region
      %66 = dma.done [#allocation5], 3072
    $region41: #{actor_forward.1} parent=1 // pred_fallthru
      _
    %v68 = vld [vmem:[%s0] sm:$0xf]
    %v69 = vld [vmem:[#allocation2] sm:$0xff]
    %v70 = vld [vmem:[#allocation2 + $0x8] sm:$0xff]
    %v71 = vld [vmem:[#allocation2 + $0x10] sm:$0xff]
    %v72 = vld [vmem:[#allocation2 + $0x18] sm:$0xff]
    %v73 = vld [vmem:[#allocation2 + $0x20] sm:$0xff]
    %v74 = vld [vmem:[#allocation2 + $0x28] sm:$0xff]
    %v75 = vld [vmem:[#allocation2 + $0x30] sm:$0xff]
    %v76 = vld [vmem:[#allocation2 + $0x38] sm:$0xff]
    %v77 = vld [vmem:[#allocation2 + $0x40] sm:$0xff]
    %v78 = vld [vmem:[#allocation2 + $0x48] sm:$0xff]
    %v79 = vld [vmem:[#allocation2 + $0x50] sm:$0xff]
    %v80 = vld [vmem:[#allocation2 + $0x58] sm:$0xff]
    %v81 = vld [vmem:[#allocation2 + $0x60] sm:$0xff]
    %v82 = vld [vmem:[#allocation2 + $0x68] sm:$0xff]
    %v83 = vld [vmem:[#allocation2 + $0x70] sm:$0xff]
    %v84 = vld [vmem:[#allocation2 + $0x78] sm:$0xff]
    %v85 = vld [vmem:[#allocation2 + $0x80] sm:$0xff]
    %v86 = vld [vmem:[#allocation2 + $0x88] sm:$0xff]
    %v87 = vld [vmem:[#allocation2 + $0x90] sm:$0xff]
    %v88 = vld [vmem:[#allocation2 + $0x98] sm:$0xff]
    %v89 = vld [vmem:[#allocation2 + $0xa0] sm:$0xff]
    %v90 = vld [vmem:[#allocation2 + $0xa8] sm:$0xff]
    %v91 = vld [vmem:[#allocation2 + $0xb0] sm:$0xff]
    %v92 = vld [vmem:[#allocation2 + $0xb8] sm:$0xff]
    %v93 = vld [vmem:[#allocation2 + $0xc0] sm:$0xff]
    %v94 = vld [vmem:[#allocation2 + $0xc8] sm:$0xff]
    %v95 = vld [vmem:[#allocation2 + $0xd0] sm:$0xff]
    %v96 = vld [vmem:[#allocation2 + $0xd8] sm:$0xff]
    %v97 = vld [vmem:[#allocation2 + $0xe0] sm:$0xff]
    %v98 = vld [vmem:[#allocation2 + $0xe8] sm:$0xff]
    %v99 = vld [vmem:[#allocation2 + $0xf0] sm:$0xff]
    %v100 = vld [vmem:[#allocation2 + $0xf8] sm:$0xff]
    %v101 = vld [vmem:[%s2] sm:$0xf]
    %v103 = vlaneseq
    %v104 = vshrl.u32 %v103, 7
    %v105 = vsub.s32 0, %v104
    %v106 = vrot.slane %v101, %v105
    %v107 = vlaneseq
    %v108 = vshrl.u32 %v107, 7
    %v109 = vsub.s32 1, %v108
    %v110 = vrot.slane %v101, %v109
    %v111 = vlaneseq
    %v112 = vshrl.u32 %v111, 7
    %v113 = vsub.s32 2, %v112
    %v114 = vrot.slane %v101, %v113
    %v115 = vlaneseq
    %v116 = vshrl.u32 %v115, 7
    %v117 = vsub.s32 3, %v116
    %v118 = vrot.slane %v101, %v117
    %v155 = vunpack.c.l.b16 %v69
    %v156 = vunpack.c.h.b16 %v69
    %v157 = vunpack.c.l.b16 %v70
    %v158 = vunpack.c.h.b16 %v70
    %v159 = vunpack.c.l.b16 %v71
    %v160 = vunpack.c.h.b16 %v71
    %v161 = vunpack.c.l.b16 %v72
    %v162 = vunpack.c.h.b16 %v72
    %v163 = vunpack.c.l.b16 %v73
    %v164 = vunpack.c.h.b16 %v73
    %v165 = vunpack.c.l.b16 %v74
    %v166 = vunpack.c.h.b16 %v74
    %v167 = vunpack.c.l.b16 %v75
    %v168 = vunpack.c.h.b16 %v75
    %v169 = vunpack.c.l.b16 %v76
    %v170 = vunpack.c.h.b16 %v76
    %v171 = vunpack.c.l.b16 %v77
    %v172 = vunpack.c.h.b16 %v77
    %v173 = vunpack.c.l.b16 %v78
    %v174 = vunpack.c.h.b16 %v78
    %v175 = vunpack.c.l.b16 %v79
    %v176 = vunpack.c.h.b16 %v79
    %v177 = vunpack.c.l.b16 %v80
    %v178 = vunpack.c.h.b16 %v80
    %v179 = vunpack.c.l.b16 %v81
    %v180 = vunpack.c.h.b16 %v81
    %v181 = vunpack.c.l.b16 %v82
    %v182 = vunpack.c.h.b16 %v82
    %v183 = vunpack.c.l.b16 %v83
    %v184 = vunpack.c.h.b16 %v83
    %v185 = vunpack.c.l.b16 %v84
    %v186 = vunpack.c.h.b16 %v84
    %v187 = vunpack.c.l.b16 %v85
    %v188 = vunpack.c.h.b16 %v85
    %v189 = vunpack.c.l.b16 %v86
    %v190 = vunpack.c.h.b16 %v86
    %v191 = vunpack.c.l.b16 %v87
    %v192 = vunpack.c.h.b16 %v87
    %v193 = vunpack.c.l.b16 %v88
    %v194 = vunpack.c.h.b16 %v88
    %v195 = vunpack.c.l.b16 %v89
    %v196 = vunpack.c.h.b16 %v89
    %v197 = vunpack.c.l.b16 %v90
    %v198 = vunpack.c.h.b16 %v90
    %v199 = vunpack.c.l.b16 %v91
    %v200 = vunpack.c.h.b16 %v91
    %v201 = vunpack.c.l.b16 %v92
    %v202 = vunpack.c.h.b16 %v92
    %v203 = vunpack.c.l.b16 %v93
    %v204 = vunpack.c.h.b16 %v93
    %v205 = vunpack.c.l.b16 %v94
    %v206 = vunpack.c.h.b16 %v94
    %v207 = vunpack.c.l.b16 %v95
    %v208 = vunpack.c.h.b16 %v95
    %v209 = vunpack.c.l.b16 %v96
    %v210 = vunpack.c.h.b16 %v96
    %v211 = vunpack.c.l.b16 %v97
    %v212 = vunpack.c.h.b16 %v97
    %v213 = vunpack.c.l.b16 %v98
    %v214 = vunpack.c.h.b16 %v98
    %v215 = vunpack.c.l.b16 %v99
    %v216 = vunpack.c.h.b16 %v99
    %v217 = vunpack.c.l.b16 %v100
    %v218 = vunpack.c.h.b16 %v100
    %v219 = vpack.c.b16 %v159, %v155
    %v220 = vpack.c.b16 %v160, %v156
    %v221 = vpack.c.b16 %v161, %v157
    %v222 = vpack.c.b16 %v162, %v158
    %v223 = vpack.c.b16 %v167, %v163
    %v224 = vpack.c.b16 %v168, %v164
    %v225 = vpack.c.b16 %v169, %v165
    %v226 = vpack.c.b16 %v170, %v166
    %v227 = vpack.c.b16 %v175, %v171
    %v228 = vpack.c.b16 %v176, %v172
    %v229 = vpack.c.b16 %v177, %v173
    %v230 = vpack.c.b16 %v178, %v174
    %v231 = vpack.c.b16 %v183, %v179
    %v232 = vpack.c.b16 %v184, %v180
    %v233 = vpack.c.b16 %v185, %v181
    %v234 = vpack.c.b16 %v186, %v182
    %v235 = vpack.c.b16 %v191, %v187
    %v236 = vpack.c.b16 %v192, %v188
    %v237 = vpack.c.b16 %v193, %v189
    %v238 = vpack.c.b16 %v194, %v190
    %v239 = vpack.c.b16 %v199, %v195
    %v240 = vpack.c.b16 %v200, %v196
    %v241 = vpack.c.b16 %v201, %v197
    %v242 = vpack.c.b16 %v202, %v198
    %v243 = vpack.c.b16 %v207, %v203
    %v244 = vpack.c.b16 %v208, %v204
    %v245 = vpack.c.b16 %v209, %v205
    %v246 = vpack.c.b16 %v210, %v206
    %v247 = vpack.c.b16 %v215, %v211
    %v248 = vpack.c.b16 %v216, %v212
    %v249 = vpack.c.b16 %v217, %v213
    %v250 = vpack.c.b16 %v218, %v214
    %283 = vmatprep.subr.bf16.mxu0 %v248
    %284 = vmatpush1.bf16.msra.mxu0 %v247
    %285 = vmatprep.subr.bf16.mxu0 %v244
    %286 = vmatpush1.bf16.msra.mxu0 %v243
    %287 = vmatprep.subr.bf16.mxu0 %v240
    %288 = vmatpush1.bf16.msra.mxu0 %v239
    %289 = vmatprep.subr.bf16.mxu0 %v236
    %290 = vmatpush1.bf16.msra.mxu0 %v235
    %291 = vmatprep.subr.bf16.mxu0 %v232
    %292 = vmatpush1.bf16.msra.mxu0 %v231
    %293 = vmatprep.subr.bf16.mxu0 %v228
    %294 = vmatpush1.bf16.msra.mxu0 %v227
    %295 = vmatprep.subr.bf16.mxu0 %v224
    %296 = vmatpush1.bf16.msra.mxu0 %v223
    %297 = vmatprep.subr.bf16.mxu0 %v220
    %298 = vmatpush1.bf16.msra.mxu0 %v219
    %299 = vmatprep.subr.bf16.mxu0 0
    %300 = vmatpush2.bf16.msra.mxu0 0
    %301 = vmatprep.subr.bf16.mxu0 0
    %302 = vmatpush2.bf16.msra.mxu0 0
    %303 = vmatprep.subr.bf16.mxu0 0
    %304 = vmatpush2.bf16.msra.mxu0 0
    %305 = vmatprep.subr.bf16.mxu0 0
    %306 = vmatpush2.bf16.msra.mxu0 0
    %307 = vmatprep.subr.bf16.mxu0 0
    %308 = vmatpush2.bf16.msra.mxu0 0
    %309 = vmatprep.subr.bf16.mxu0 0
    %310 = vmatpush2.bf16.msra.mxu0 0
    %311 = vmatprep.subr.bf16.mxu0 0
    %312 = vmatpush2.bf16.msra.mxu0 0
    %313 = vmatprep.subr.bf16.mxu0 0
    %314 = vmatpush2.bf16.msra.mxu0 0
    %315 = vmatprep.mubr.bf16.mxu0 0
    %316 = vmatmul.mubr.bf16.gmra.mxu0 %v68
    %v317 = vpop.f32.mrf.mxu0
    %v318 = vadd.f32 %v106, %v317
    %v319 = vpop.f32.mrf.mxu0
    %v320 = vadd.f32 %v110, %v319
    %v321 = vpop.f32.mrf.mxu0
    %v322 = vpop.f32.mrf.mxu0
    %323 = vdwg.mxu0
    %324 = vmatprep.subr.bf16.mxu0 %v250
    %325 = vmatpush1.bf16.msra.mxu0 %v249
    %326 = vmatprep.subr.bf16.mxu0 %v246
    %327 = vmatpush1.bf16.msra.mxu0 %v245
    %328 = vmatprep.subr.bf16.mxu0 %v242
    %329 = vmatpush1.bf16.msra.mxu0 %v241
    %330 = vmatprep.subr.bf16.mxu0 %v238
    %331 = vmatpush1.bf16.msra.mxu0 %v237
    %332 = vmatprep.subr.bf16.mxu0 %v234
    %333 = vmatpush1.bf16.msra.mxu0 %v233
    %334 = vmatprep.subr.bf16.mxu0 %v230
    %335 = vmatpush1.bf16.msra.mxu0 %v229
    %336 = vmatprep.subr.bf16.mxu0 %v226
    %337 = vmatpush1.bf16.msra.mxu0 %v225
    %338 = vmatprep.subr.bf16.mxu0 %v222
    %339 = vmatpush1.bf16.msra.mxu0 %v221
    %340 = vmatprep.subr.bf16.mxu0 0
    %341 = vmatpush2.bf16.msra.mxu0 0
    %342 = vmatprep.subr.bf16.mxu0 0
    %343 = vmatpush2.bf16.msra.mxu0 0
    %344 = vmatprep.subr.bf16.mxu0 0
    %345 = vmatpush2.bf16.msra.mxu0 0
    %346 = vmatprep.subr.bf16.mxu0 0
    %347 = vmatpush2.bf16.msra.mxu0 0
    %348 = vmatprep.subr.bf16.mxu0 0
    %349 = vmatpush2.bf16.msra.mxu0 0
    %350 = vmatprep.subr.bf16.mxu0 0
    %351 = vmatpush2.bf16.msra.mxu0 0
    %352 = vmatprep.subr.bf16.mxu0 0
    %353 = vmatpush2.bf16.msra.mxu0 0
    %354 = vmatprep.subr.bf16.mxu0 0
    %355 = vmatpush2.bf16.msra.mxu0 0
    %356 = vmatprep.mubr.bf16.mxu0 0
    %357 = vmatmul.mubr.bf16.gmra.mxu0 %v68
    %v358 = vpop.f32.mrf.mxu0
    %v359 = vadd.f32 %v114, %v358
    %v360 = vpop.f32.mrf.mxu0
    %v361 = vadd.f32 %v118, %v360
    %v362 = vpop.f32.mrf.mxu0
    %v363 = vpop.f32.mrf.mxu0
    %364 = vdwg.mxu0
    %v365 = vmax.f32 %v318, 0.0
    %v366 = vmax.f32 %v320, 0.0
    %v367 = vmax.f32 %v359, 0.0
    %v368 = vmax.f32 %v361, 0.0
    %v369 = vpack.c.bf16 %v365, %v365
    %v370 = vpack.c.bf16 %v366, %v366
    %v371 = vpack.c.bf16 %v367, %v367
    %v372 = vpack.c.bf16 %v368, %v368
    %v373 = vld [vmem:[#allocation4] sm:$0xff]
    %v374 = vld [vmem:[#allocation4 + $0x8] sm:$0xf]
    %v375 = vld [vmem:[#allocation4 + $0xc] sm:$0xff]
    %v376 = vld [vmem:[#allocation4 + $0x14] sm:$0xf]
    %v377 = vld [vmem:[#allocation4 + $0x18] sm:$0xff]
    %v378 = vld [vmem:[#allocation4 + $0x20] sm:$0xf]
    %v379 = vld [vmem:[#allocation4 + $0x24] sm:$0xff]
    %v380 = vld [vmem:[#allocation4 + $0x2c] sm:$0xf]
    %v381 = vld [vmem:[#allocation4 + $0x30] sm:$0xff]
    %v382 = vld [vmem:[#allocation4 + $0x38] sm:$0xf]
    %v383 = vld [vmem:[#allocation4 + $0x3c] sm:$0xff]
    %v384 = vld [vmem:[#allocation4 + $0x44] sm:$0xf]
    %v385 = vld [vmem:[#allocation4 + $0x48] sm:$0xff]
    %v386 = vld [vmem:[#allocation4 + $0x50] sm:$0xf]
    %v387 = vld [vmem:[#allocation4 + $0x54] sm:$0xff]
    %v388 = vld [vmem:[#allocation4 + $0x5c] sm:$0xf]
    %v389 = vld [vmem:[#allocation4 + $0x60] sm:$0xff]
    %v390 = vld [vmem:[#allocation4 + $0x68] sm:$0xf]
    %v391 = vld [vmem:[#allocation4 + $0x6c] sm:$0xff]
    %v392 = vld [vmem:[#allocation4 + $0x74] sm:$0xf]
    %v393 = vld [vmem:[#allocation4 + $0x78] sm:$0xff]
    %v394 = vld [vmem:[#allocation4 + $0x80] sm:$0xf]
    %v395 = vld [vmem:[#allocation4 + $0x84] sm:$0xff]
    %v396 = vld [vmem:[#allocation4 + $0x8c] sm:$0xf]
    %v397 = vld [vmem:[#allocation4 + $0x90] sm:$0xff]
    %v398 = vld [vmem:[#allocation4 + $0x98] sm:$0xf]
    %v399 = vld [vmem:[#allocation4 + $0x9c] sm:$0xff]
    %v400 = vld [vmem:[#allocation4 + $0xa4] sm:$0xf]
    %v401 = vld [vmem:[#allocation4 + $0xa8] sm:$0xff]
    %v402 = vld [vmem:[#allocation4 + $0xb0] sm:$0xf]
    %v403 = vld [vmem:[#allocation4 + $0xb4] sm:$0xff]
    %v404 = vld [vmem:[#allocation4 + $0xbc] sm:$0xf]
    %v405 = vld [vmem:[#allocation4 + $0xc0] sm:$0xff]
    %v406 = vld [vmem:[#allocation4 + $0xc8] sm:$0xf]
    %v407 = vld [vmem:[#allocation4 + $0xcc] sm:$0xff]
    %v408 = vld [vmem:[#allocation4 + $0xd4] sm:$0xf]
    %v409 = vld [vmem:[#allocation4 + $0xd8] sm:$0xff]
    %v410 = vld [vmem:[#allocation4 + $0xe0] sm:$0xf]
    %v411 = vld [vmem:[#allocation4 + $0xe4] sm:$0xff]
    %v412 = vld [vmem:[#allocation4 + $0xec] sm:$0xf]
    %v413 = vld [vmem:[#allocation4 + $0xf0] sm:$0xff]
    %v414 = vld [vmem:[#allocation4 + $0xf8] sm:$0xf]
    %v415 = vld [vmem:[#allocation4 + $0xfc] sm:$0xff]
    %v416 = vld [vmem:[#allocation4 + $0x104] sm:$0xf]
    %v417 = vld [vmem:[#allocation4 + $0x108] sm:$0xff]
    %v418 = vld [vmem:[#allocation4 + $0x110] sm:$0xf]
    %v419 = vld [vmem:[#allocation4 + $0x114] sm:$0xff]
    %v420 = vld [vmem:[#allocation4 + $0x11c] sm:$0xf]
    %v421 = vld [vmem:[#allocation4 + $0x120] sm:$0xff]
    %v422 = vld [vmem:[#allocation4 + $0x128] sm:$0xf]
    %v423 = vld [vmem:[#allocation4 + $0x12c] sm:$0xff]
    %v424 = vld [vmem:[#allocation4 + $0x134] sm:$0xf]
    %v425 = vld [vmem:[#allocation4 + $0x138] sm:$0xff]
    %v426 = vld [vmem:[#allocation4 + $0x140] sm:$0xf]
    %v427 = vld [vmem:[#allocation4 + $0x144] sm:$0xff]
    %v428 = vld [vmem:[#allocation4 + $0x14c] sm:$0xf]
    %v429 = vld [vmem:[#allocation4 + $0x150] sm:$0xff]
    %v430 = vld [vmem:[#allocation4 + $0x158] sm:$0xf]
    %v431 = vld [vmem:[#allocation4 + $0x15c] sm:$0xff]
    %v432 = vld [vmem:[#allocation4 + $0x164] sm:$0xf]
    %v433 = vld [vmem:[#allocation4 + $0x168] sm:$0xff]
    %v434 = vld [vmem:[#allocation4 + $0x170] sm:$0xf]
    %v435 = vld [vmem:[#allocation4 + $0x174] sm:$0xff]
    %v436 = vld [vmem:[#allocation4 + $0x17c] sm:$0xf]
    %v437 = vld [vmem:[#allocation4 + $0x180] sm:$0xff]
    %v438 = vld [vmem:[#allocation4 + $0x188] sm:$0xf]
    %v439 = vld [vmem:[#allocation4 + $0x18c] sm:$0xff]
    %v440 = vld [vmem:[#allocation4 + $0x194] sm:$0xf]
    %v441 = vld [vmem:[#allocation4 + $0x198] sm:$0xff]
    %v442 = vld [vmem:[#allocation4 + $0x1a0] sm:$0xf]
    %v443 = vld [vmem:[#allocation4 + $0x1a4] sm:$0xff]
    %v444 = vld [vmem:[#allocation4 + $0x1ac] sm:$0xf]
    %v445 = vld [vmem:[#allocation4 + $0x1b0] sm:$0xff]
    %v446 = vld [vmem:[#allocation4 + $0x1b8] sm:$0xf]
    %v447 = vld [vmem:[#allocation4 + $0x1bc] sm:$0xff]
    %v448 = vld [vmem:[#allocation4 + $0x1c4] sm:$0xf]
    %v449 = vld [vmem:[#allocation4 + $0x1c8] sm:$0xff]
    %v450 = vld [vmem:[#allocation4 + $0x1d0] sm:$0xf]
    %v451 = vld [vmem:[#allocation4 + $0x1d4] sm:$0xff]
    %v452 = vld [vmem:[#allocation4 + $0x1dc] sm:$0xf]
    %v453 = vld [vmem:[#allocation4 + $0x1e0] sm:$0xff]
    %v454 = vld [vmem:[#allocation4 + $0x1e8] sm:$0xf]
    %v455 = vld [vmem:[#allocation4 + $0x1ec] sm:$0xff]
    %v456 = vld [vmem:[#allocation4 + $0x1f4] sm:$0xf]
    %v457 = vld [vmem:[#allocation4 + $0x1f8] sm:$0xff]
    %v458 = vld [vmem:[#allocation4 + $0x200] sm:$0xf]
    %v459 = vld [vmem:[#allocation4 + $0x204] sm:$0xff]
    %v460 = vld [vmem:[#allocation4 + $0x20c] sm:$0xf]
    %v461 = vld [vmem:[#allocation4 + $0x210] sm:$0xff]
    %v462 = vld [vmem:[#allocation4 + $0x218] sm:$0xf]
    %v463 = vld [vmem:[#allocation4 + $0x21c] sm:$0xff]
    %v464 = vld [vmem:[#allocation4 + $0x224] sm:$0xf]
    %v465 = vld [vmem:[#allocation4 + $0x228] sm:$0xff]
    %v466 = vld [vmem:[#allocation4 + $0x230] sm:$0xf]
    %v467 = vld [vmem:[#allocation4 + $0x234] sm:$0xff]
    %v468 = vld [vmem:[#allocation4 + $0x23c] sm:$0xf]
    %v469 = vld [vmem:[#allocation4 + $0x240] sm:$0xff]
    %v470 = vld [vmem:[#allocation4 + $0x248] sm:$0xf]
    %v471 = vld [vmem:[#allocation4 + $0x24c] sm:$0xff]
    %v472 = vld [vmem:[#allocation4 + $0x254] sm:$0xf]
    %v473 = vld [vmem:[#allocation4 + $0x258] sm:$0xff]
    %v474 = vld [vmem:[#allocation4 + $0x260] sm:$0xf]
    %v475 = vld [vmem:[#allocation4 + $0x264] sm:$0xff]
    %v476 = vld [vmem:[#allocation4 + $0x26c] sm:$0xf]
    %v477 = vld [vmem:[#allocation4 + $0x270] sm:$0xff]
    %v478 = vld [vmem:[#allocation4 + $0x278] sm:$0xf]
    %v479 = vld [vmem:[#allocation4 + $0x27c] sm:$0xff]
    %v480 = vld [vmem:[#allocation4 + $0x284] sm:$0xf]
    %v481 = vld [vmem:[#allocation4 + $0x288] sm:$0xff]
    %v482 = vld [vmem:[#allocation4 + $0x290] sm:$0xf]
    %v483 = vld [vmem:[#allocation4 + $0x294] sm:$0xff]
    %v484 = vld [vmem:[#allocation4 + $0x29c] sm:$0xf]
    %v485 = vld [vmem:[#allocation4 + $0x2a0] sm:$0xff]
    %v486 = vld [vmem:[#allocation4 + $0x2a8] sm:$0xf]
    %v487 = vld [vmem:[#allocation4 + $0x2ac] sm:$0xff]
    %v488 = vld [vmem:[#allocation4 + $0x2b4] sm:$0xf]
    %v489 = vld [vmem:[#allocation4 + $0x2b8] sm:$0xff]
    %v490 = vld [vmem:[#allocation4 + $0x2c0] sm:$0xf]
    %v491 = vld [vmem:[#allocation4 + $0x2c4] sm:$0xff]
    %v492 = vld [vmem:[#allocation4 + $0x2cc] sm:$0xf]
    %v493 = vld [vmem:[#allocation4 + $0x2d0] sm:$0xff]
    %v494 = vld [vmem:[#allocation4 + $0x2d8] sm:$0xf]
    %v495 = vld [vmem:[#allocation4 + $0x2dc] sm:$0xff]
    %v496 = vld [vmem:[#allocation4 + $0x2e4] sm:$0xf]
    %v497 = vld [vmem:[#allocation4 + $0x2e8] sm:$0xff]
    %v498 = vld [vmem:[#allocation4 + $0x2f0] sm:$0xf]
    %v499 = vld [vmem:[#allocation4 + $0x2f4] sm:$0xff]
    %v500 = vld [vmem:[#allocation4 + $0x2fc] sm:$0xf]
    %v501 = vld [vmem:[%s4] sm:$0x7]
    %v503 = vlaneseq
    %v504 = vshrl.u32 %v503, 7
    %v505 = vsub.s32 0, %v504
    %v506 = vrot.slane %v501, %v505
    %v507 = vlaneseq
    %v508 = vshrl.u32 %v507, 7
    %v509 = vsub.s32 1, %v508
    %v510 = vrot.slane %v501, %v509
    %v511 = vlaneseq
    %v512 = vshrl.u32 %v511, 7
    %v513 = vsub.s32 2, %v512
    %v514 = vrot.slane %v501, %v513
    %v646 = vunpack.c.l.b16 %v373
    %v647 = vunpack.c.h.b16 %v373
    %v648 = vunpack.c.l.b16 %v374
    %v649 = vunpack.c.l.b16 %v375
    %v650 = vunpack.c.h.b16 %v375
    %v651 = vunpack.c.l.b16 %v376
    %v652 = vunpack.c.l.b16 %v377
    %v653 = vunpack.c.h.b16 %v377
    %v654 = vunpack.c.l.b16 %v378
    %v655 = vunpack.c.l.b16 %v379
    %v656 = vunpack.c.h.b16 %v379
    %v657 = vunpack.c.l.b16 %v380
    %v658 = vunpack.c.l.b16 %v381
    %v659 = vunpack.c.h.b16 %v381
    %v660 = vunpack.c.l.b16 %v382
    %v661 = vunpack.c.l.b16 %v383
    %v662 = vunpack.c.h.b16 %v383
    %v663 = vunpack.c.l.b16 %v384
    %v664 = vunpack.c.l.b16 %v385
    %v665 = vunpack.c.h.b16 %v385
    %v666 = vunpack.c.l.b16 %v386
    %v667 = vunpack.c.l.b16 %v387
    %v668 = vunpack.c.h.b16 %v387
    %v669 = vunpack.c.l.b16 %v388
    %v670 = vunpack.c.l.b16 %v389
    %v671 = vunpack.c.h.b16 %v389
    %v672 = vunpack.c.l.b16 %v390
    %v673 = vunpack.c.l.b16 %v391
    %v674 = vunpack.c.h.b16 %v391
    %v675 = vunpack.c.l.b16 %v392
    %v676 = vunpack.c.l.b16 %v393
    %v677 = vunpack.c.h.b16 %v393
    %v678 = vunpack.c.l.b16 %v394
    %v679 = vunpack.c.l.b16 %v395
    %v680 = vunpack.c.h.b16 %v395
    %v681 = vunpack.c.l.b16 %v396
    %v682 = vunpack.c.l.b16 %v397
    %v683 = vunpack.c.h.b16 %v397
    %v684 = vunpack.c.l.b16 %v398
    %v685 = vunpack.c.l.b16 %v399
    %v686 = vunpack.c.h.b16 %v399
    %v687 = vunpack.c.l.b16 %v400
    %v688 = vunpack.c.l.b16 %v401
    %v689 = vunpack.c.h.b16 %v401
    %v690 = vunpack.c.l.b16 %v402
    %v691 = vunpack.c.l.b16 %v403
    %v692 = vunpack.c.h.b16 %v403
    %v693 = vunpack.c.l.b16 %v404
    %v694 = vunpack.c.l.b16 %v405
    %v695 = vunpack.c.h.b16 %v405
    %v696 = vunpack.c.l.b16 %v406
    %v697 = vunpack.c.l.b16 %v407
    %v698 = vunpack.c.h.b16 %v407
    %v699 = vunpack.c.l.b16 %v408
    %v700 = vunpack.c.l.b16 %v409
    %v701 = vunpack.c.h.b16 %v409
    %v702 = vunpack.c.l.b16 %v410
    %v703 = vunpack.c.l.b16 %v411
    %v704 = vunpack.c.h.b16 %v411
    %v705 = vunpack.c.l.b16 %v412
    %v706 = vunpack.c.l.b16 %v413
    %v707 = vunpack.c.h.b16 %v413
    %v708 = vunpack.c.l.b16 %v414
    %v709 = vunpack.c.l.b16 %v415
    %v710 = vunpack.c.h.b16 %v415
    %v711 = vunpack.c.l.b16 %v416
    %v712 = vunpack.c.l.b16 %v417
    %v713 = vunpack.c.h.b16 %v417
    %v714 = vunpack.c.l.b16 %v418
    %v715 = vunpack.c.l.b16 %v419
    %v716 = vunpack.c.h.b16 %v419
    %v717 = vunpack.c.l.b16 %v420
    %v718 = vunpack.c.l.b16 %v421
    %v719 = vunpack.c.h.b16 %v421
    %v720 = vunpack.c.l.b16 %v422
    %v721 = vunpack.c.l.b16 %v423
    %v722 = vunpack.c.h.b16 %v423
    %v723 = vunpack.c.l.b16 %v424
    %v724 = vunpack.c.l.b16 %v425
    %v725 = vunpack.c.h.b16 %v425
    %v726 = vunpack.c.l.b16 %v426
    %v727 = vunpack.c.l.b16 %v427
    %v728 = vunpack.c.h.b16 %v427
    %v729 = vunpack.c.l.b16 %v428
    %v730 = vunpack.c.l.b16 %v429
    %v731 = vunpack.c.h.b16 %v429
    %v732 = vunpack.c.l.b16 %v430
    %v733 = vunpack.c.l.b16 %v431
    %v734 = vunpack.c.h.b16 %v431
    %v735 = vunpack.c.l.b16 %v432
    %v736 = vunpack.c.l.b16 %v433
    %v737 = vunpack.c.h.b16 %v433
    %v738 = vunpack.c.l.b16 %v434
    %v739 = vunpack.c.l.b16 %v435
    %v740 = vunpack.c.h.b16 %v435
    %v741 = vunpack.c.l.b16 %v436
    %v742 = vunpack.c.l.b16 %v437
    %v743 = vunpack.c.h.b16 %v437
    %v744 = vunpack.c.l.b16 %v438
    %v745 = vunpack.c.l.b16 %v439
    %v746 = vunpack.c.h.b16 %v439
    %v747 = vunpack.c.l.b16 %v440
    %v748 = vunpack.c.l.b16 %v441
    %v749 = vunpack.c.h.b16 %v441
    %v750 = vunpack.c.l.b16 %v442
    %v751 = vunpack.c.l.b16 %v443
    %v752 = vunpack.c.h.b16 %v443
    %v753 = vunpack.c.l.b16 %v444
    %v754 = vunpack.c.l.b16 %v445
    %v755 = vunpack.c.h.b16 %v445
    %v756 = vunpack.c.l.b16 %v446
    %v757 = vunpack.c.l.b16 %v447
    %v758 = vunpack.c.h.b16 %v447
    %v759 = vunpack.c.l.b16 %v448
    %v760 = vunpack.c.l.b16 %v449
    %v761 = vunpack.c.h.b16 %v449
    %v762 = vunpack.c.l.b16 %v450
    %v763 = vunpack.c.l.b16 %v451
    %v764 = vunpack.c.h.b16 %v451
    %v765 = vunpack.c.l.b16 %v452
    %v766 = vunpack.c.l.b16 %v453
    %v767 = vunpack.c.h.b16 %v453
    %v768 = vunpack.c.l.b16 %v454
    %v769 = vunpack.c.l.b16 %v455
    %v770 = vunpack.c.h.b16 %v455
    %v771 = vunpack.c.l.b16 %v456
    %v772 = vunpack.c.l.b16 %v457
    %v773 = vunpack.c.h.b16 %v457
    %v774 = vunpack.c.l.b16 %v458
    %v775 = vunpack.c.l.b16 %v459
    %v776 = vunpack.c.h.b16 %v459
    %v777 = vunpack.c.l.b16 %v460
    %v778 = vunpack.c.l.b16 %v461
    %v779 = vunpack.c.h.b16 %v461
    %v780 = vunpack.c.l.b16 %v462
    %v781 = vunpack.c.l.b16 %v463
    %v782 = vunpack.c.h.b16 %v463
    %v783 = vunpack.c.l.b16 %v464
    %v784 = vunpack.c.l.b16 %v465
    %v785 = vunpack.c.h.b16 %v465
    %v786 = vunpack.c.l.b16 %v466
    %v787 = vunpack.c.l.b16 %v467
    %v788 = vunpack.c.h.b16 %v467
    %v789 = vunpack.c.l.b16 %v468
    %v790 = vunpack.c.l.b16 %v469
    %v791 = vunpack.c.h.b16 %v469
    %v792 = vunpack.c.l.b16 %v470
    %v793 = vunpack.c.l.b16 %v471
    %v794 = vunpack.c.h.b16 %v471
    %v795 = vunpack.c.l.b16 %v472
    %v796 = vunpack.c.l.b16 %v473
    %v797 = vunpack.c.h.b16 %v473
    %v798 = vunpack.c.l.b16 %v474
    %v799 = vunpack.c.l.b16 %v475
    %v800 = vunpack.c.h.b16 %v475
    %v801 = vunpack.c.l.b16 %v476
    %v802 = vunpack.c.l.b16 %v477
    %v803 = vunpack.c.h.b16 %v477
    %v804 = vunpack.c.l.b16 %v478
    %v805 = vunpack.c.l.b16 %v479
    %v806 = vunpack.c.h.b16 %v479
    %v807 = vunpack.c.l.b16 %v480
    %v808 = vunpack.c.l.b16 %v481
    %v809 = vunpack.c.h.b16 %v481
    %v810 = vunpack.c.l.b16 %v482
    %v811 = vunpack.c.l.b16 %v483
    %v812 = vunpack.c.h.b16 %v483
    %v813 = vunpack.c.l.b16 %v484
    %v814 = vunpack.c.l.b16 %v485
    %v815 = vunpack.c.h.b16 %v485
    %v816 = vunpack.c.l.b16 %v486
    %v817 = vunpack.c.l.b16 %v487
    %v818 = vunpack.c.h.b16 %v487
    %v819 = vunpack.c.l.b16 %v488
    %v820 = vunpack.c.l.b16 %v489
    %v821 = vunpack.c.h.b16 %v489
    %v822 = vunpack.c.l.b16 %v490
    %v823 = vunpack.c.l.b16 %v491
    %v824 = vunpack.c.h.b16 %v491
    %v825 = vunpack.c.l.b16 %v492
    %v826 = vunpack.c.l.b16 %v493
    %v827 = vunpack.c.h.b16 %v493
    %v828 = vunpack.c.l.b16 %v494
    %v829 = vunpack.c.l.b16 %v495
    %v830 = vunpack.c.h.b16 %v495
    %v831 = vunpack.c.l.b16 %v496
    %v832 = vunpack.c.l.b16 %v497
    %v833 = vunpack.c.h.b16 %v497
    %v834 = vunpack.c.l.b16 %v498
    %v835 = vunpack.c.l.b16 %v499
    %v836 = vunpack.c.h.b16 %v499
    %v837 = vunpack.c.l.b16 %v500
    %v838 = vpack.c.b16 %v649, %v646
    %v839 = vpack.c.b16 %v650, %v647
    %v840 = vpack.c.b16 %v651, %v648
    %v841 = vpack.c.b16 %v655, %v652
    %v842 = vpack.c.b16 %v656, %v653
    %v843 = vpack.c.b16 %v657, %v654
    %v844 = vpack.c.b16 %v661, %v658
    %v845 = vpack.c.b16 %v662, %v659
    %v846 = vpack.c.b16 %v663, %v660
    %v847 = vpack.c.b16 %v667, %v664
    %v848 = vpack.c.b16 %v668, %v665
    %v849 = vpack.c.b16 %v669, %v666
    %v850 = vpack.c.b16 %v673, %v670
    %v851 = vpack.c.b16 %v674, %v671
    %v852 = vpack.c.b16 %v675, %v672
    %v853 = vpack.c.b16 %v679, %v676
    %v854 = vpack.c.b16 %v680, %v677
    %v855 = vpack.c.b16 %v681, %v678
    %v856 = vpack.c.b16 %v685, %v682
    %v857 = vpack.c.b16 %v686, %v683
    %v858 = vpack.c.b16 %v687, %v684
    %v859 = vpack.c.b16 %v691, %v688
    %v860 = vpack.c.b16 %v692, %v689
    %v861 = vpack.c.b16 %v693, %v690
    %v862 = vpack.c.b16 %v697, %v694
    %v863 = vpack.c.b16 %v698, %v695
    %v864 = vpack.c.b16 %v699, %v696
    %v865 = vpack.c.b16 %v703, %v700
    %v866 = vpack.c.b16 %v704, %v701
    %v867 = vpack.c.b16 %v705, %v702
    %v868 = vpack.c.b16 %v709, %v706
    %v869 = vpack.c.b16 %v710, %v707
    %v870 = vpack.c.b16 %v711, %v708
    %v871 = vpack.c.b16 %v715, %v712
    %v872 = vpack.c.b16 %v716, %v713
    %v873 = vpack.c.b16 %v717, %v714
    %v874 = vpack.c.b16 %v721, %v718
    %v875 = vpack.c.b16 %v722, %v719
    %v876 = vpack.c.b16 %v723, %v720
    %v877 = vpack.c.b16 %v727, %v724
    %v878 = vpack.c.b16 %v728, %v725
    %v879 = vpack.c.b16 %v729, %v726
    %v880 = vpack.c.b16 %v733, %v730
    %v881 = vpack.c.b16 %v734, %v731
    %v882 = vpack.c.b16 %v735, %v732
    %v883 = vpack.c.b16 %v739, %v736
    %v884 = vpack.c.b16 %v740, %v737
    %v885 = vpack.c.b16 %v741, %v738
    %v886 = vpack.c.b16 %v745, %v742
    %v887 = vpack.c.b16 %v746, %v743
    %v888 = vpack.c.b16 %v747, %v744
    %v889 = vpack.c.b16 %v751, %v748
    %v890 = vpack.c.b16 %v752, %v749
    %v891 = vpack.c.b16 %v753, %v750
    %v892 = vpack.c.b16 %v757, %v754
    %v893 = vpack.c.b16 %v758, %v755
    %v894 = vpack.c.b16 %v759, %v756
    %v895 = vpack.c.b16 %v763, %v760
    %v896 = vpack.c.b16 %v764, %v761
    %v897 = vpack.c.b16 %v765, %v762
    %v898 = vpack.c.b16 %v769, %v766
    %v899 = vpack.c.b16 %v770, %v767
    %v900 = vpack.c.b16 %v771, %v768
    %v901 = vpack.c.b16 %v775, %v772
    %v902 = vpack.c.b16 %v776, %v773
    %v903 = vpack.c.b16 %v777, %v774
    %v904 = vpack.c.b16 %v781, %v778
    %v905 = vpack.c.b16 %v782, %v779
    %v906 = vpack.c.b16 %v783, %v780
    %v907 = vpack.c.b16 %v787, %v784
    %v908 = vpack.c.b16 %v788, %v785
    %v909 = vpack.c.b16 %v789, %v786
    %v910 = vpack.c.b16 %v793, %v790
    %v911 = vpack.c.b16 %v794, %v791
    %v912 = vpack.c.b16 %v795, %v792
    %v913 = vpack.c.b16 %v799, %v796
    %v914 = vpack.c.b16 %v800, %v797
    %v915 = vpack.c.b16 %v801, %v798
    %v916 = vpack.c.b16 %v805, %v802
    %v917 = vpack.c.b16 %v806, %v803
    %v918 = vpack.c.b16 %v807, %v804
    %v919 = vpack.c.b16 %v811, %v808
    %v920 = vpack.c.b16 %v812, %v809
    %v921 = vpack.c.b16 %v813, %v810
    %v922 = vpack.c.b16 %v817, %v814
    %v923 = vpack.c.b16 %v818, %v815
    %v924 = vpack.c.b16 %v819, %v816
    %v925 = vpack.c.b16 %v823, %v820
    %v926 = vpack.c.b16 %v824, %v821
    %v927 = vpack.c.b16 %v825, %v822
    %v928 = vpack.c.b16 %v829, %v826
    %v929 = vpack.c.b16 %v830, %v827
    %v930 = vpack.c.b16 %v831, %v828
    %v931 = vpack.c.b16 %v835, %v832
    %v932 = vpack.c.b16 %v836, %v833
    %v933 = vpack.c.b16 %v837, %v834
    %1030 = vmatprep.subr.bf16.mxu0 %v860
    %1031 = vmatpush1.bf16.msra.mxu0 %v859
    %1032 = vmatprep.subr.bf16.mxu0 %v857
    %1033 = vmatpush1.bf16.msra.mxu0 %v856
    %1034 = vmatprep.subr.bf16.mxu0 %v854
    %1035 = vmatpush1.bf16.msra.mxu0 %v853
    %1036 = vmatprep.subr.bf16.mxu0 %v851
    %1037 = vmatpush1.bf16.msra.mxu0 %v850
    %1038 = vmatprep.subr.bf16.mxu0 %v848
    %1039 = vmatpush1.bf16.msra.mxu0 %v847
    %1040 = vmatprep.subr.bf16.mxu0 %v845
    %1041 = vmatpush1.bf16.msra.mxu0 %v844
    %1042 = vmatprep.subr.bf16.mxu0 %v842
    %1043 = vmatpush1.bf16.msra.mxu0 %v841
    %1044 = vmatprep.subr.bf16.mxu0 %v839
    %1045 = vmatpush1.bf16.msra.mxu0 %v838
    %1046 = vmatprep.subr.bf16.mxu0 %v884
    %1047 = vmatpush2.bf16.msra.mxu0 %v883
    %1048 = vmatprep.subr.bf16.mxu0 %v881
    %1049 = vmatpush2.bf16.msra.mxu0 %v880
    %1050 = vmatprep.subr.bf16.mxu0 %v878
    %1051 = vmatpush2.bf16.msra.mxu0 %v877
    %1052 = vmatprep.subr.bf16.mxu0 %v875
    %1053 = vmatpush2.bf16.msra.mxu0 %v874
    %1054 = vmatprep.subr.bf16.mxu0 %v872
    %1055 = vmatpush2.bf16.msra.mxu0 %v871
    %1056 = vmatprep.subr.bf16.mxu0 %v869
    %1057 = vmatpush2.bf16.msra.mxu0 %v868
    %1058 = vmatprep.subr.bf16.mxu0 %v866
    %1059 = vmatpush2.bf16.msra.mxu0 %v865
    %1060 = vmatprep.subr.bf16.mxu0 %v863
    %1061 = vmatpush2.bf16.msra.mxu0 %v862
    %1062 = vmatprep.mubr.bf16.mxu0 %v370
    %1063 = vmatmul.mubr.bf16.gmra.mxu0 %v369
    %v1064 = vpop.f32.mrf.mxu0
    %v1065 = vadd.f32 %v506, %v1064
    %v1066 = vpop.f32.mrf.mxu0
    %v1067 = vadd.f32 %v510, %v1066
    %v1068 = vpop.f32.mrf.mxu0
    %v1069 = vpop.f32.mrf.mxu0
    %1070 = vdwg.mxu0
    %1071 = vmatprep.subr.bf16.mxu0 %v908
    %1072 = vmatpush1.bf16.msra.mxu0 %v907
    %1073 = vmatprep.subr.bf16.mxu0 %v905
    %1074 = vmatpush1.bf16.msra.mxu0 %v904
    %1075 = vmatprep.subr.bf16.mxu0 %v902
    %1076 = vmatpush1.bf16.msra.mxu0 %v901
    %1077 = vmatprep.subr.bf16.mxu0 %v899
    %1078 = vmatpush1.bf16.msra.mxu0 %v898
    %1079 = vmatprep.subr.bf16.mxu0 %v896
    %1080 = vmatpush1.bf16.msra.mxu0 %v895
    %1081 = vmatprep.subr.bf16.mxu0 %v893
    %1082 = vmatpush1.bf16.msra.mxu0 %v892
    %1083 = vmatprep.subr.bf16.mxu0 %v890
    %1084 = vmatpush1.bf16.msra.mxu0 %v889
    %1085 = vmatprep.subr.bf16.mxu0 %v887
    %1086 = vmatpush1.bf16.msra.mxu0 %v886
    %1087 = vmatprep.subr.bf16.mxu0 %v932
    %1088 = vmatpush2.bf16.msra.mxu0 %v931
    %1089 = vmatprep.subr.bf16.mxu0 %v929
    %1090 = vmatpush2.bf16.msra.mxu0 %v928
    %1091 = vmatprep.subr.bf16.mxu0 %v926
    %1092 = vmatpush2.bf16.msra.mxu0 %v925
    %1093 = vmatprep.subr.bf16.mxu0 %v923
    %1094 = vmatpush2.bf16.msra.mxu0 %v922
    %1095 = vmatprep.subr.bf16.mxu0 %v920
    %1096 = vmatpush2.bf16.msra.mxu0 %v919
    %1097 = vmatprep.subr.bf16.mxu0 %v917
    %1098 = vmatpush2.bf16.msra.mxu0 %v916
    %1099 = vmatprep.subr.bf16.mxu0 %v914
    %1100 = vmatpush2.bf16.msra.mxu0 %v913
    %1101 = vmatprep.subr.bf16.mxu0 %v911
    %1102 = vmatpush2.bf16.msra.mxu0 %v910
    %1103 = vmatprep.mubr.bf16.mxu0 %v372
    %1104 = vmatmul.mubr.bf16.gmra.mxu0 %v371
    %v1105 = vpop.f32.mrf.mxu0
    %v1106 = vadd.f32 %v1065, %v1105
    %v1107 = vpop.f32.mrf.mxu0
    %v1108 = vadd.f32 %v1067, %v1107
    %v1109 = vpop.f32.mrf.mxu0
    %v1110 = vpop.f32.mrf.mxu0
    %1111 = vdwg.mxu0
    %1112 = vmatprep.subr.bf16.mxu0 0
    %1113 = vmatpush1.bf16.msra.mxu0 %v861
    %1114 = vmatprep.subr.bf16.mxu0 0
    %1115 = vmatpush1.bf16.msra.mxu0 %v858
    %1116 = vmatprep.subr.bf16.mxu0 0
    %1117 = vmatpush1.bf16.msra.mxu0 %v855
    %1118 = vmatprep.subr.bf16.mxu0 0
    %1119 = vmatpush1.bf16.msra.mxu0 %v852
    %1120 = vmatprep.subr.bf16.mxu0 0
    %1121 = vmatpush1.bf16.msra.mxu0 %v849
    %1122 = vmatprep.subr.bf16.mxu0 0
    %1123 = vmatpush1.bf16.msra.mxu0 %v846
    %1124 = vmatprep.subr.bf16.mxu0 0
    %1125 = vmatpush1.bf16.msra.mxu0 %v843
    %1126 = vmatprep.subr.bf16.mxu0 0
    %1127 = vmatpush1.bf16.msra.mxu0 %v840
    %1128 = vmatprep.subr.bf16.mxu0 0
    %1129 = vmatpush2.bf16.msra.mxu0 %v885
    %1130 = vmatprep.subr.bf16.mxu0 0
    %1131 = vmatpush2.bf16.msra.mxu0 %v882
    %1132 = vmatprep.subr.bf16.mxu0 0
    %1133 = vmatpush2.bf16.msra.mxu0 %v879
    %1134 = vmatprep.subr.bf16.mxu0 0
    %1135 = vmatpush2.bf16.msra.mxu0 %v876
    %1136 = vmatprep.subr.bf16.mxu0 0
    %1137 = vmatpush2.bf16.msra.mxu0 %v873
    %1138 = vmatprep.subr.bf16.mxu0 0
    %1139 = vmatpush2.bf16.msra.mxu0 %v870
    %1140 = vmatprep.subr.bf16.mxu0 0
    %1141 = vmatpush2.bf16.msra.mxu0 %v867
    %1142 = vmatprep.subr.bf16.mxu0 0
    %1143 = vmatpush2.bf16.msra.mxu0 %v864
    %1144 = vmatprep.mubr.bf16.mxu0 %v370
    %1145 = vmatmul.mubr.bf16.gmra.mxu0 %v369
    %v1146 = vpop.f32.mrf.mxu0
    %v1147 = vadd.f32 %v514, %v1146
    %v1148 = vpop.f32.mrf.mxu0
    %v1149 = vpop.f32.mrf.mxu0
    %v1150 = vpop.f32.mrf.mxu0
    %1151 = vdwg.mxu0
    %1152 = vmatprep.subr.bf16.mxu0 0
    %1153 = vmatpush1.bf16.msra.mxu0 %v909
    %1154 = vmatprep.subr.bf16.mxu0 0
    %1155 = vmatpush1.bf16.msra.mxu0 %v906
    %1156 = vmatprep.subr.bf16.mxu0 0
    %1157 = vmatpush1.bf16.msra.mxu0 %v903
    %1158 = vmatprep.subr.bf16.mxu0 0
    %1159 = vmatpush1.bf16.msra.mxu0 %v900
    %1160 = vmatprep.subr.bf16.mxu0 0
    %1161 = vmatpush1.bf16.msra.mxu0 %v897
    %1162 = vmatprep.subr.bf16.mxu0 0
    %1163 = vmatpush1.bf16.msra.mxu0 %v894
    %1164 = vmatprep.subr.bf16.mxu0 0
    %1165 = vmatpush1.bf16.msra.mxu0 %v891
    %1166 = vmatprep.subr.bf16.mxu0 0
    %1167 = vmatpush1.bf16.msra.mxu0 %v888
    %1168 = vmatprep.subr.bf16.mxu0 0
    %1169 = vmatpush2.bf16.msra.mxu0 %v933
    %1170 = vmatprep.subr.bf16.mxu0 0
    %1171 = vmatpush2.bf16.msra.mxu0 %v930
    %1172 = vmatprep.subr.bf16.mxu0 0
    %1173 = vmatpush2.bf16.msra.mxu0 %v927
    %1174 = vmatprep.subr.bf16.mxu0 0
    %1175 = vmatpush2.bf16.msra.mxu0 %v924
    %1176 = vmatprep.subr.bf16.mxu0 0
    %1177 = vmatpush2.bf16.msra.mxu0 %v921
    %1178 = vmatprep.subr.bf16.mxu0 0
    %1179 = vmatpush2.bf16.msra.mxu0 %v918
    %1180 = vmatprep.subr.bf16.mxu0 0
    %1181 = vmatpush2.bf16.msra.mxu0 %v915
    %1182 = vmatprep.subr.bf16.mxu0 0
    %1183 = vmatpush2.bf16.msra.mxu0 %v912
    %1184 = vmatprep.mubr.bf16.mxu0 %v372
    %1185 = vmatmul.mubr.bf16.gmra.mxu0 %v371
    %v1186 = vpop.f32.mrf.mxu0
    %v1187 = vadd.f32 %v1147, %v1186
    %v1188 = vpop.f32.mrf.mxu0
    %v1189 = vpop.f32.mrf.mxu0
    %v1190 = vpop.f32.mrf.mxu0
    %1191 = vdwg.mxu0
    %v1192 = vmax.f32 %v1106, 0.0
    %v1193 = vmax.f32 %v1108, 0.0
    %v1194 = vmax.f32 %v1187, 0.0
    %v1195 = vpack.c.bf16 %v1192, %v1192
    %v1196 = vpack.c.bf16 %v1193, %v1193
    %v1197 = vpack.c.bf16 %v1194, %v1194
    %v1198 = vld [vmem:[#allocation6] sm:$0xf]
    %v1199 = vld [vmem:[#allocation6 + $0x4] sm:$0xf]
    %v1200 = vld [vmem:[#allocation6 + $0x8] sm:$0xf]
    %v1201 = vld [vmem:[#allocation6 + $0xc] sm:$0xf]
    %v1202 = vld [vmem:[#allocation6 + $0x10] sm:$0xf]
    %v1203 = vld [vmem:[#allocation6 + $0x14] sm:$0xf]
    %v1204 = vld [vmem:[#allocation6 + $0x18] sm:$0xf]
    %v1205 = vld [vmem:[#allocation6 + $0x1c] sm:$0xf]
    %v1206 = vld [vmem:[#allocation6 + $0x20] sm:$0xf]
    %v1207 = vld [vmem:[#allocation6 + $0x24] sm:$0xf]
    %v1208 = vld [vmem:[#allocation6 + $0x28] sm:$0xf]
    %v1209 = vld [vmem:[#allocation6 + $0x2c] sm:$0xf]
    %v1210 = vld [vmem:[#allocation6 + $0x30] sm:$0xf]
    %v1211 = vld [vmem:[#allocation6 + $0x34] sm:$0xf]
    %v1212 = vld [vmem:[#allocation6 + $0x38] sm:$0xf]
    %v1213 = vld [vmem:[#allocation6 + $0x3c] sm:$0xf]
    %v1214 = vld [vmem:[#allocation6 + $0x40] sm:$0xf]
    %v1215 = vld [vmem:[#allocation6 + $0x44] sm:$0xf]
    %v1216 = vld [vmem:[#allocation6 + $0x48] sm:$0xf]
    %v1217 = vld [vmem:[#allocation6 + $0x4c] sm:$0xf]
    %v1218 = vld [vmem:[#allocation6 + $0x50] sm:$0xf]
    %v1219 = vld [vmem:[#allocation6 + $0x54] sm:$0xf]
    %v1220 = vld [vmem:[#allocation6 + $0x58] sm:$0xf]
    %v1221 = vld [vmem:[#allocation6 + $0x5c] sm:$0xf]
    %v1222 = vld [vmem:[#allocation6 + $0x60] sm:$0xf]
    %v1223 = vld [vmem:[#allocation6 + $0x64] sm:$0xf]
    %v1224 = vld [vmem:[#allocation6 + $0x68] sm:$0xf]
    %v1225 = vld [vmem:[#allocation6 + $0x6c] sm:$0xf]
    %v1226 = vld [vmem:[#allocation6 + $0x70] sm:$0xf]
    %v1227 = vld [vmem:[#allocation6 + $0x74] sm:$0xf]
    %v1228 = vld [vmem:[#allocation6 + $0x78] sm:$0xf]
    %v1229 = vld [vmem:[#allocation6 + $0x7c] sm:$0xf]
    %v1230 = vld [vmem:[#allocation6 + $0x80] sm:$0xf]
    %v1231 = vld [vmem:[#allocation6 + $0x84] sm:$0xf]
    %v1232 = vld [vmem:[#allocation6 + $0x88] sm:$0xf]
    %v1233 = vld [vmem:[#allocation6 + $0x8c] sm:$0xf]
    %v1234 = vld [vmem:[#allocation6 + $0x90] sm:$0xf]
    %v1235 = vld [vmem:[#allocation6 + $0x94] sm:$0xf]
    %v1236 = vld [vmem:[#allocation6 + $0x98] sm:$0xf]
    %v1237 = vld [vmem:[#allocation6 + $0x9c] sm:$0xf]
    %v1238 = vld [vmem:[#allocation6 + $0xa0] sm:$0xf]
    %v1239 = vld [vmem:[#allocation6 + $0xa4] sm:$0xf]
    %v1240 = vld [vmem:[#allocation6 + $0xa8] sm:$0xf]
    %v1241 = vld [vmem:[#allocation6 + $0xac] sm:$0xf]
    %v1242 = vld [vmem:[#allocation6 + $0xb0] sm:$0xf]
    %v1243 = vld [vmem:[#allocation6 + $0xb4] sm:$0xf]
    %v1244 = vld [vmem:[#allocation6 + $0xb8] sm:$0xf]
    %v1245 = vld [vmem:[#allocation6 + $0xbc] sm:$0xf]
    %v1246 = vld [vmem:[%s6] sm:$0x1]
    %v1248 = vlaneseq
    %v1249 = vshrl.u32 %v1248, 7
    %v1250 = vsub.s32 0, %v1249
    %v1251 = vrot.slane %v1246, %v1250
    %v1301 = vunpack.c.l.b16 %v1198
    %v1302 = vunpack.c.l.b16 %v1199
    %v1303 = vunpack.c.l.b16 %v1200
    %v1304 = vunpack.c.l.b16 %v1201
    %v1305 = vunpack.c.l.b16 %v1202
    %v1306 = vunpack.c.l.b16 %v1203
    %v1307 = vunpack.c.l.b16 %v1204
    %v1308 = vunpack.c.l.b16 %v1205
    %v1309 = vunpack.c.l.b16 %v1206
    %v1310 = vunpack.c.l.b16 %v1207
    %v1311 = vunpack.c.l.b16 %v1208
    %v1312 = vunpack.c.l.b16 %v1209
    %v1313 = vunpack.c.l.b16 %v1210
    %v1314 = vunpack.c.l.b16 %v1211
    %v1315 = vunpack.c.l.b16 %v1212
    %v1316 = vunpack.c.l.b16 %v1213
    %v1317 = vunpack.c.l.b16 %v1214
    %v1318 = vunpack.c.l.b16 %v1215
    %v1319 = vunpack.c.l.b16 %v1216
    %v1320 = vunpack.c.l.b16 %v1217
    %v1321 = vunpack.c.l.b16 %v1218
    %v1322 = vunpack.c.l.b16 %v1219
    %v1323 = vunpack.c.l.b16 %v1220
    %v1324 = vunpack.c.l.b16 %v1221
    %v1325 = vunpack.c.l.b16 %v1222
    %v1326 = vunpack.c.l.b16 %v1223
    %v1327 = vunpack.c.l.b16 %v1224
    %v1328 = vunpack.c.l.b16 %v1225
    %v1329 = vunpack.c.l.b16 %v1226
    %v1330 = vunpack.c.l.b16 %v1227
    %v1331 = vunpack.c.l.b16 %v1228
    %v1332 = vunpack.c.l.b16 %v1229
    %v1333 = vunpack.c.l.b16 %v1230
    %v1334 = vunpack.c.l.b16 %v1231
    %v1335 = vunpack.c.l.b16 %v1232
    %v1336 = vunpack.c.l.b16 %v1233
    %v1337 = vunpack.c.l.b16 %v1234
    %v1338 = vunpack.c.l.b16 %v1235
    %v1339 = vunpack.c.l.b16 %v1236
    %v1340 = vunpack.c.l.b16 %v1237
    %v1341 = vunpack.c.l.b16 %v1238
    %v1342 = vunpack.c.l.b16 %v1239
    %v1343 = vunpack.c.l.b16 %v1240
    %v1344 = vunpack.c.l.b16 %v1241
    %v1345 = vunpack.c.l.b16 %v1242
    %v1346 = vunpack.c.l.b16 %v1243
    %v1347 = vunpack.c.l.b16 %v1244
    %v1348 = vunpack.c.l.b16 %v1245
    %v1349 = vpack.c.b16 %v1302, %v1301
    %v1350 = vpack.c.b16 %v1304, %v1303
    %v1351 = vpack.c.b16 %v1306, %v1305
    %v1352 = vpack.c.b16 %v1308, %v1307
    %v1353 = vpack.c.b16 %v1310, %v1309
    %v1354 = vpack.c.b16 %v1312, %v1311
    %v1355 = vpack.c.b16 %v1314, %v1313
    %v1356 = vpack.c.b16 %v1316, %v1315
    %v1357 = vpack.c.b16 %v1318, %v1317
    %v1358 = vpack.c.b16 %v1320, %v1319
    %v1359 = vpack.c.b16 %v1322, %v1321
    %v1360 = vpack.c.b16 %v1324, %v1323
    %v1361 = vpack.c.b16 %v1326, %v1325
    %v1362 = vpack.c.b16 %v1328, %v1327
    %v1363 = vpack.c.b16 %v1330, %v1329
    %v1364 = vpack.c.b16 %v1332, %v1331
    %v1365 = vpack.c.b16 %v1334, %v1333
    %v1366 = vpack.c.b16 %v1336, %v1335
    %v1367 = vpack.c.b16 %v1338, %v1337
    %v1368 = vpack.c.b16 %v1340, %v1339
    %v1369 = vpack.c.b16 %v1342, %v1341
    %v1370 = vpack.c.b16 %v1344, %v1343
    %v1371 = vpack.c.b16 %v1346, %v1345
    %v1372 = vpack.c.b16 %v1348, %v1347
    %1397 = vmatprep.subr.bf16.mxu0 0
    %1398 = vmatpush1.bf16.msra.mxu0 %v1356
    %1399 = vmatprep.subr.bf16.mxu0 0
    %1400 = vmatpush1.bf16.msra.mxu0 %v1355
    %1401 = vmatprep.subr.bf16.mxu0 0
    %1402 = vmatpush1.bf16.msra.mxu0 %v1354
    %1403 = vmatprep.subr.bf16.mxu0 0
    %1404 = vmatpush1.bf16.msra.mxu0 %v1353
    %1405 = vmatprep.subr.bf16.mxu0 0
    %1406 = vmatpush1.bf16.msra.mxu0 %v1352
    %1407 = vmatprep.subr.bf16.mxu0 0
    %1408 = vmatpush1.bf16.msra.mxu0 %v1351
    %1409 = vmatprep.subr.bf16.mxu0 0
    %1410 = vmatpush1.bf16.msra.mxu0 %v1350
    %1411 = vmatprep.subr.bf16.mxu0 0
    %1412 = vmatpush1.bf16.msra.mxu0 %v1349
    %1413 = vmatprep.subr.bf16.mxu0 0
    %1414 = vmatpush2.bf16.msra.mxu0 %v1364
    %1415 = vmatprep.subr.bf16.mxu0 0
    %1416 = vmatpush2.bf16.msra.mxu0 %v1363
    %1417 = vmatprep.subr.bf16.mxu0 0
    %1418 = vmatpush2.bf16.msra.mxu0 %v1362
    %1419 = vmatprep.subr.bf16.mxu0 0
    %1420 = vmatpush2.bf16.msra.mxu0 %v1361
    %1421 = vmatprep.subr.bf16.mxu0 0
    %1422 = vmatpush2.bf16.msra.mxu0 %v1360
    %1423 = vmatprep.subr.bf16.mxu0 0
    %1424 = vmatpush2.bf16.msra.mxu0 %v1359
    %1425 = vmatprep.subr.bf16.mxu0 0
    %1426 = vmatpush2.bf16.msra.mxu0 %v1358
    %1427 = vmatprep.subr.bf16.mxu0 0
    %1428 = vmatpush2.bf16.msra.mxu0 %v1357
    %1429 = vmatprep.mubr.bf16.mxu0 %v1196
    %1430 = vmatmul.mubr.bf16.gmra.mxu0 %v1195
    %v1431 = vpop.f32.mrf.mxu0
    %v1432 = vadd.f32 %v1251, %v1431
    %v1433 = vpop.f32.mrf.mxu0
    %v1434 = vpop.f32.mrf.mxu0
    %v1435 = vpop.f32.mrf.mxu0
    %1436 = vdwg.mxu0
    %1437 = vmatprep.subr.bf16.mxu0 0
    %1438 = vmatpush1.bf16.msra.mxu0 %v1372
    %1439 = vmatprep.subr.bf16.mxu0 0
    %1440 = vmatpush1.bf16.msra.mxu0 %v1371
    %1441 = vmatprep.subr.bf16.mxu0 0
    %1442 = vmatpush1.bf16.msra.mxu0 %v1370
    %1443 = vmatprep.subr.bf16.mxu0 0
    %1444 = vmatpush1.bf16.msra.mxu0 %v1369
    %1445 = vmatprep.subr.bf16.mxu0 0
    %1446 = vmatpush1.bf16.msra.mxu0 %v1368
    %1447 = vmatprep.subr.bf16.mxu0 0
    %1448 = vmatpush1.bf16.msra.mxu0 %v1367
    %1449 = vmatprep.subr.bf16.mxu0 0
    %1450 = vmatpush1.bf16.msra.mxu0 %v1366
    %1451 = vmatprep.subr.bf16.mxu0 0
    %1452 = vmatpush1.bf16.msra.mxu0 %v1365
    %1453 = vmatprep.subr.bf16.mxu0 0
    %1454 = vmatpush2.bf16.msra.mxu0 0
    %1455 = vmatprep.subr.bf16.mxu0 0
    %1456 = vmatpush2.bf16.msra.mxu0 0
    %1457 = vmatprep.subr.bf16.mxu0 0
    %1458 = vmatpush2.bf16.msra.mxu0 0
    %1459 = vmatprep.subr.bf16.mxu0 0
    %1460 = vmatpush2.bf16.msra.mxu0 0
    %1461 = vmatprep.subr.bf16.mxu0 0
    %1462 = vmatpush2.bf16.msra.mxu0 0
    %1463 = vmatprep.subr.bf16.mxu0 0
    %1464 = vmatpush2.bf16.msra.mxu0 0
    %1465 = vmatprep.subr.bf16.mxu0 0
    %1466 = vmatpush2.bf16.msra.mxu0 0
    %1467 = vmatprep.subr.bf16.mxu0 0
    %1468 = vmatpush2.bf16.msra.mxu0 0
    %1469 = vmatprep.mubr.bf16.mxu0 0
    %1470 = vmatmul.mubr.bf16.gmra.mxu0 %v1197
    %v1471 = vpop.f32.mrf.mxu0
    %v1472 = vadd.f32 %v1432, %v1471
    %v1473 = vpop.f32.mrf.mxu0
    %v1474 = vpop.f32.mrf.mxu0
    %v1475 = vpop.f32.mrf.mxu0
    %1476 = vdwg.mxu0
    %v1477 = vtanh.pop %v1472
    %1478 = vst [vmem:[%s7] sm:$0xff] %v1477
    // Predicated region
    $region42: #{actor_forward.1} parent=1 // pred_check
      _
    $region43: #{actor_forward.1} parent=1 // pred_check_branch
      %1480 = sbr.rel (0) target = $region45
    $region44: #{actor_forward.1} parent=1 // pred_region
      _
    $region45: #{actor_forward.1} parent=1 // pred_fallthru
      _
    // Predicated region
    $region46: #{actor_forward.1} parent=1 // pred_check
      _
    $region47: #{actor_forward.1} parent=1 // pred_check_branch
      %1482 = sbr.rel (0) target = $region49
    $region48: #{actor_forward.1} parent=1 // pred_region
      _
    $region49: #{actor_forward.1} parent=1 // pred_fallthru
      _
    %1483 = vsyncpa [#allocation3], 1
    %1484 = vsyncpa [#allocation5], 1

</llo_original>
